<compile_context>
chip_gen: v5e
topology: v5e:2x2
jax: 0.10.0
libtpu: 0.0.40
codegen_flags: <defaults>
</compile_context>

<pallas_src>
import functools

import jax
import jax.numpy as jnp
from jax.experimental import pallas as pl
from jax.experimental.pallas import tpu as pltpu

BN_EPS = 1e-5          # nn.BatchNorm1d default
L2_EPS = 1e-12         # F.normalize default
_MiB = 1024 * 1024


def _round_up(x, m):
    return (x + m - 1) // m * m


def _vmem_capacity_bytes():
    """Physical VMEM of the local TPU; assume the smallest (v7x: 64 MiB/TC) if unknown."""
    try:
        return int(pltpu.get_tpu_info().vmem_capacity_bytes)
    except Exception:
        return 64 * _MiB


def _block_vmem_bytes(hb, B, Din, Dh, Dout, TP):
    """Rough per-grid-step VMEM footprint: double-buffered blocks + scratch + transients."""
    bf16, f32, dbl = 2, 4, 2
    lane = lambda n: max(_round_up(n, 128), 128)
    blocks = (
        dbl * B * lane(Din) * bf16 +            # x (shared; conservatively counted x2)
        dbl * Din * hb * Dh * bf16 +            # W1 (heads folded)
        dbl * 8 * lane(hb * Dh) * f32 +         # BN gamma/beta
        dbl * hb * Dh * lane(Dout) * bf16 +     # W2
        dbl * hb * 8 * lane(Dout) * f32 +       # b2
        dbl * hb * Dout * TP * bf16 +           # Wproto tile
        dbl * hb * B * TP * f32 +               # logits out tile
        dbl * hb * B * lane(Dout) * f32         # z out
    )
    scratch = B * hb * Dh * f32 + hb * B * lane(Dout) * bf16
    transient = B * hb * Dh * f32 + 4 * B * lane(max(TP, Dout)) * f32
    return blocks + scratch + transient


def _choose_p_tile(P_pad, max_tile=2048):
    """Largest multiple-of-128 divisor of P_pad that is <= max_tile: bounds the Wp
    and logits blocks independently of the prototype count."""
    n = P_pad // 128
    best = 1
    for d in range(1, n + 1):
        if n % d == 0 and d * 128 <= max_tile:
            best = d
    return best * 128


def _choose_heads_per_block(H, B, Din, Dh, Dout, TP, budget):
    """Pick heads-per-block so that (a) per-step blocks fit the VMEM budget,
    (b) there are >= 2 (ideally >= 4) head blocks -> weight-DMA/compute pipelining
    and megacore sharding of the head axis, (c) the unrolled per-head tail stays
    short (hb <= 8).  Falls back to hb = H when head-fold alignment forbids less."""
    est = lambda hb: _block_vmem_bytes(hb, B, Din, Dh, Dout, TP)
    cands = [hb for hb in range(1, H + 1)
             if H % hb == 0 and (hb == H or (hb * Dh) % 128 == 0)]
    fit = [hb for hb in cands if est(hb) <= budget]
    if not fit:
        fit = [min(cands, key=est)]
    multi = [hb for hb in fit if H // hb >= 2]
    if multi:
        depth = max(min(H // hb, 4) for hb in multi)            # prefer >= 4 blocks
        pool = [hb for hb in multi if min(H // hb, 4) == depth]
        small = [hb for hb in pool if hb <= 8]                  # bound tail unroll
        return max(small) if small else min(pool)
    return max(fit)


def _multihead_kernel(x_ref, w1_ref, gb_ref, w2_ref, b2_ref, wp_ref,
                      logits_ref, z_out_ref, h1_ref, z_ref, *, hb, dh):
    """Grid = (head_blocks "parallel", prototype_tiles "arbitrary").

    x_ref     : [B, Din]        bf16  (shared across all grid steps)
    w1_ref    : [Din, hb*Dh]    bf16  (heads folded into the lane/N dim, head-major)
    gb_ref    : [2, hb*Dh]      f32   (row 0 = BN gamma, row 1 = BN beta)
    w2_ref    : [hb, Dh, Dout]  bf16
    b2_ref    : [hb, 1, Dout]   f32
    wp_ref    : [hb, Dout, TP]  bf16  (one zero-padded prototype tile)
    logits_ref: [hb, B, TP]     f32   out  (lane-dense; pad columns are exact zeros)
    z_out_ref : [hb, B, Dout]   f32   out  (written once per head block, at p == 0)
    h1_ref    : [B, hb*Dh]      f32   scratch (pre-BN activations)
    z_ref     : [hb, B, Dout]   bf16  scratch (normalized z, reused by every P tile)
    """
    p_idx = pl.program_id(1)

    # ---- projector + BN(train) + ReLU + layer 2 + L2-normalize: once per head block ----
    @pl.when(p_idx == 0)
    def _projector():
        x = x_ref[...]                                    # [B, Din] bf16
        b = x.shape[0]
        # Layer 1 for all hb heads in one wide MXU matmul.  Bias b1 omitted on
        # purpose: it cancels exactly under *training-mode* BatchNorm batch stats.
        h1 = jnp.dot(x, w1_ref[...], preferred_element_type=jnp.float32)   # [B, hb*Dh]
        inv_b = 1.0 / b
        mean = jnp.sum(h1, axis=0, keepdims=True) * inv_b
        mean_sq = jnp.sum(h1 * h1, axis=0, keepdims=True) * inv_b
        var = jnp.maximum(mean_sq - mean * mean, 0.0)     # clamp one-pass cancellation
        gamma = gb_ref[0:1, :]
        beta = gb_ref[1:2, :]
        scale = jax.lax.rsqrt(var + BN_EPS) * gamma       # BN folded to h1*scale + shift
        shift = beta - mean * scale
        h1_ref[...] = h1                                  # retire the f32 slab to VMEM

        for h in range(hb):                               # hb kept small (<= 8)
            c0 = h * dh
            hc = h1_ref[:, c0:c0 + dh] * scale[:, c0:c0 + dh] + shift[:, c0:c0 + dh]
            hc = jnp.maximum(hc, 0.0).astype(jnp.bfloat16)                 # [B, Dh]
            zp = jnp.dot(hc, w2_ref[h],
                         preferred_element_type=jnp.float32) + b2_ref[h]   # [B, Dout]
            # F.normalize(z, dim=-1):  z * rsqrt(max(||z||^2, eps^2))
            sumsq = jnp.sum(zp * zp, axis=-1, keepdims=True)
            z = zp * jax.lax.rsqrt(jnp.maximum(sumsq, L2_EPS * L2_EPS))
            z_out_ref[h] = z                              # aligned store, no concatenate
            z_ref[h] = z.astype(jnp.bfloat16)

    # ---- prototype logits for this P tile (every grid step) ----
    # TODO(synk): optional fp8 path for z @ Wp on v7x (quantize z / pre-quantize Wp).
    for h in range(hb):
        logits_ref[h] = jnp.dot(z_ref[h], wp_ref[h],
                                preferred_element_type=jnp.float32)        # [B, TP]


def pack_params(w1, gamma, beta, w2, b2, wproto):
    """Pre-pack parameters ONCE (at parameter-update time), not per forward call:
    head-fold transpose of W1, bf16 casts, gamma/beta fuse, Wp zero-padded to a
    multiple of 128 along the prototype axis."""
    H, Din, Dh = w1.shape
    Dout = w2.shape[-1]
    P = wproto.shape[-1]
    P_pad = _round_up(P, 128)
    w1_wide = jnp.transpose(w1, (1, 0, 2)).reshape(Din, H * Dh).astype(jnp.bfloat16)
    gb = jnp.stack([gamma.reshape(H * Dh), beta.reshape(H * Dh)], axis=0).astype(jnp.float32)
    w2_bf = w2.astype(jnp.bfloat16)
    b2r = b2.reshape(H, 1, Dout).astype(jnp.float32)
    wp_pad = jnp.zeros((H, Dout, P_pad), jnp.bfloat16).at[:, :, :P].set(
        wproto.astype(jnp.bfloat16))
    return w1_wide, gb, w2_bf, b2r, wp_pad


@functools.partial(jax.jit, static_argnames=("num_prototypes", "heads_per_block"))
def multihead_forward(feats, w1_wide, gb, w2_bf, b2r, wp_pad, *,
                      num_prototypes, heads_per_block=None):
    """feats: [B, Din] f32; packed params from pack_params().
    Returns (logits [H, B, num_prototypes], z [H, B, Dout]) in f32."""
    H, Dh, Dout = w2_bf.shape
    Din = w1_wide.shape[0]
    P_pad = wp_pad.shape[-1]
    B = feats.shape[0]
    assert w1_wide.shape[1] == H * Dh and gb.shape == (2, H * Dh)
    assert P_pad % 128 == 0 and num_prototypes <= P_pad

    TP = _choose_p_tile(P_pad)
    npt = P_pad // TP

    capacity = _vmem_capacity_bytes()
    budget = int(0.68 * capacity)          # leave room for double-buffering slack
    hb = (_choose_heads_per_block(H, B, Din, Dh, Dout, TP, budget)
          if heads_per_block is None else heads_per_block)
    assert H % hb == 0
    if hb != H:
        assert (hb * Dh) % 128 == 0, "heads_per_block*hidden_dim must be a multiple of 128"
    nblk = H // hb

    vmem_limit = min(max(int(1.25 * _block_vmem_bytes(hb, B, Din, Dh, Dout, TP)),
                         32 * _MiB), 128 * _MiB)

    x_bf = feats.astype(jnp.bfloat16)
    kernel = functools.partial(_multihead_kernel, hb=hb, dh=Dh)

    grid_spec = pltpu.PrefetchScalarGridSpec(
        num_scalar_prefetch=0,
        grid=(nblk, npt),
        in_specs=[
            pl.BlockSpec((B, Din), lambda i, p: (0, 0)),            # x (shared)
            pl.BlockSpec((Din, hb * Dh), lambda i, p: (0, i)),      # W1, heads folded
            pl.BlockSpec((2, hb * Dh), lambda i, p: (0, i)),        # BN gamma/beta fused
            pl.BlockSpec((hb, Dh, Dout), lambda i, p: (i, 0, 0)),   # W2
            pl.BlockSpec((hb, 1, Dout), lambda i, p: (i, 0, 0)),    # b2
            pl.BlockSpec((hb, Dout, TP), lambda i, p: (i, 0, p)),   # Wproto tile
        ],
        out_specs=[
            pl.BlockSpec((hb, B, TP), lambda i, p: (i, 0, p)),      # logits (lane-dense)
            pl.BlockSpec((hb, B, Dout), lambda i, p: (i, 0, 0)),    # z (resident over p)
        ],
        scratch_shapes=[
            pltpu.VMEM((B, hb * Dh), jnp.float32),                  # pre-BN f32 slab
            pltpu.VMEM((hb, B, Dout), jnp.bfloat16),                # z reused by P tiles
        ],
    )

    logits_pad, z = pl.pallas_call(
        kernel,
        out_shape=(jax.ShapeDtypeStruct((H, B, P_pad), jnp.float32),
                   jax.ShapeDtypeStruct((H, B, Dout), jnp.float32)),
        grid_spec=grid_spec,
        compiler_params=pltpu.CompilerParams(
            dimension_semantics=("parallel", "arbitrary"),
            vmem_limit_bytes=vmem_limit),
    )(x_bf, w1_wide, gb, w2_bf, b2r, wp_pad)

    if P_pad != num_prototypes:
        logits = logits_pad[:, :, :num_prototypes]   # pad columns are exact zeros
    else:
        logits = logits_pad
    return logits, z


def init_params(key, num_heads, input_dim, hidden_dim, output_dim, num_prototypes):
    """Deterministic synthetic init. Linear weights ~ U(-1/sqrt(fan_in), 1/sqrt(fan_in));
    BN gamma=1, beta=0; prototype rows L2-normalized (as Prototypes.normalize_prototypes)."""
    ks = jax.random.split(key, 5)

    def lin_u(k, shape, fan_in):
        bound = 1.0 / jnp.sqrt(fan_in)
        return jax.random.uniform(k, shape, jnp.float32, -bound, bound)

    # stored pre-transposed: [H, fan_in, fan_out]
    w1 = lin_u(ks[0], (num_heads, input_dim, hidden_dim), input_dim)
    b1 = lin_u(ks[1], (num_heads, hidden_dim), input_dim)   # reference-only (cancels in BN)
    gamma = jnp.ones((num_heads, hidden_dim), jnp.float32)
    beta = jnp.zeros((num_heads, hidden_dim), jnp.float32)
    w2 = lin_u(ks[2], (num_heads, hidden_dim, output_dim), hidden_dim)
    b2 = lin_u(ks[3], (num_heads, output_dim), hidden_dim)

    wp = jax.random.normal(ks[4], (num_heads, num_prototypes, output_dim), jnp.float32)
    wp = wp / jnp.maximum(
        jnp.linalg.norm(wp, axis=-1, keepdims=True), L2_EPS)   # normalize_prototypes
    wproto = jnp.transpose(wp, (0, 2, 1))                      # [H, Dout, P] for z @ Wp^T
    return w1, b1, gamma, beta, w2, b2, wproto


def reference_forward(feats, w1, b1, gamma, beta, w2, b2, wproto):
    """Pure-JAX reference mirroring the torch module (training-mode BN), with the
    same bf16-operand / f32-accumulation matmul policy as the kernel.  It DOES
    include b1 — demonstrating that dropping it in the kernel is exact."""
    bf = lambda a: a.astype(jnp.bfloat16)
    h1 = jnp.einsum('bd,hdk->hbk', bf(feats), bf(w1),
                    preferred_element_type=jnp.float32) + b1[:, None, :]
    mean = jnp.mean(h1, axis=1, keepdims=True)
    var = jnp.mean((h1 - mean) ** 2, axis=1, keepdims=True)
    h1 = (h1 - mean) / jnp.sqrt(var + BN_EPS) * gamma[:, None, :] + beta[:, None, :]
    h1 = jnp.maximum(h1, 0.0)
    zp = jnp.einsum('hbk,hko->hbo', bf(h1), bf(w2),
                    preferred_element_type=jnp.float32) + b2[:, None, :]
    z = zp / jnp.maximum(jnp.linalg.norm(zp, axis=-1, keepdims=True), L2_EPS)
    logits = jnp.einsum('hbo,hop->hbp', bf(z), bf(wproto),
                        preferred_element_type=jnp.float32)
    return logits, z


if __name__ == "__main__":
    # small shapes consistent with the module
    B, input_dim, hidden_dim, output_dim = 8, 32, 32, 16
    num_prototypes, num_heads = 24, 3

    key = jax.random.PRNGKey(0)
    k_feat, k_par = jax.random.split(key)
    feats = jax.random.normal(k_feat, (B, input_dim), jnp.float32)
    w1, b1, gamma, beta, w2, b2, wproto = init_params(
        k_par, num_heads, input_dim, hidden_dim, output_dim, num_prototypes)

    # Parameters are packed once, outside the jitted forward (no per-call
    # transpose/cast HBM traffic).
    packed = pack_params(w1, gamma, beta, w2, b2, wproto)

    logits, z = multihead_forward(feats, *packed, num_prototypes=num_prototypes)
    jax.block_until_ready((logits, z))

    ref_logits, ref_z = reference_forward(feats, w1, b1, gamma, beta, w2, b2, wproto)
    assert logits.shape == (num_heads, B, num_prototypes)
    assert z.shape == (num_heads, B, output_dim)
    assert jnp.allclose(logits, ref_logits, atol=1e-3, rtol=1e-3)
    assert jnp.allclose(z, ref_z, atol=1e-3, rtol=1e-3)

    print("KERNEL_OK")
</pallas_src>

<mosaic_0001>
module attributes {stable_mosaic.version = 11 : i64} {
  func.func @_multihead_kernel(%arg0: i32, %arg1: i32, %arg2: memref<8x32xbf16, #tpu.memory_space<vmem>>, %arg3: memref<32x96xbf16, #tpu.memory_space<vmem>>, %arg4: memref<2x96xf32, #tpu.memory_space<vmem>>, %arg5: memref<3x32x16xbf16, #tpu.memory_space<vmem>>, %arg6: memref<3x1x16xf32, #tpu.memory_space<vmem>>, %arg7: memref<3x16x128xbf16, #tpu.memory_space<vmem>>, %arg8: memref<3x8x128xf32, #tpu.memory_space<vmem>>, %arg9: memref<3x8x16xf32, #tpu.memory_space<vmem>>, %arg10: memref<8x96xf32, #tpu.memory_space<vmem>>, %arg11: memref<3x8x16xbf16, #tpu.memory_space<vmem>>) attributes {dimension_semantics = [#tpu.dimension_semantics<parallel>, #tpu.dimension_semantics<arbitrary>], iteration_bounds = array<i64: 1, 1>, scalar_prefetch = 0 : i64, scratch_operands = 2 : i64, tpu.core_type = #tpu.core_type<tc>, window_params = [{pipeline_mode = #tpu.pipeline_mode<synchronous>, transform_indices = @transform_0, window_bounds = array<i64: 8, 32>}, {transform_indices = @transform_1, window_bounds = array<i64: 32, 96>}, {transform_indices = @transform_2, window_bounds = array<i64: 2, 96>}, {transform_indices = @transform_3, window_bounds = array<i64: 3, 32, 16>}, {transform_indices = @transform_4, window_bounds = array<i64: 3, 1, 16>}, {transform_indices = @transform_5, window_bounds = array<i64: 3, 16, 128>}, {transform_indices = @transform_6, window_bounds = array<i64: 3, 8, 128>}, {transform_indices = @transform_7, window_bounds = array<i64: 3, 8, 16>}]} {
    %c0_i32 = arith.constant 0 : i32
    %0 = arith.cmpi eq, %arg1, %c0_i32 : i32
    %1 = arith.extui %0 : i1 to i32
    %c0_i32_0 = arith.constant 0 : i32
    %2 = arith.cmpi ne, %1, %c0_i32_0 : i32
    scf.if %2 {
      %c0_27 = arith.constant 0 : index
      %c0_28 = arith.constant 0 : index
      %27 = vector.load %arg2[%c0_27, %c0_28] : memref<8x32xbf16, #tpu.memory_space<vmem>>, vector<8x32xbf16>
      %c0_29 = arith.constant 0 : index
      %c0_30 = arith.constant 0 : index
      %28 = vector.load %arg3[%c0_29, %c0_30] : memref<32x96xbf16, #tpu.memory_space<vmem>>, vector<32x96xbf16>
      %cst_31 = arith.constant dense<0.000000e+00> : vector<8x96xf32>
      %29 = tpu.matmul %27, %28, %cst_31 {dimension_numbers = #tpu.dot_dimension_numbers<[1], [0], [0], [1], [0, 0, 1, 1], [], []>} : vector<8x32xbf16>, vector<32x96xbf16>, vector<8x96xf32> -> vector<8x96xf32>
      %cst_32 = arith.constant dense<0.000000e+00> : vector<96xf32>
      %30 = vector.multi_reduction <add>, %29, %cst_32 [0] : vector<8x96xf32> to vector<96xf32>
      %31 = vector.shape_cast %30 : vector<96xf32> to vector<1x96xf32>
      %cst_33 = arith.constant 1.250000e-01 : f32
      %32 = vector.broadcast %cst_33 : f32 to vector<1x96xf32>
      %33 = arith.mulf %31, %32 : vector<1x96xf32>
      %34 = arith.mulf %29, %29 : vector<8x96xf32>
      %cst_34 = arith.constant dense<0.000000e+00> : vector<96xf32>
      %35 = vector.multi_reduction <add>, %34, %cst_34 [0] : vector<8x96xf32> to vector<96xf32>
      %36 = vector.shape_cast %35 : vector<96xf32> to vector<1x96xf32>
      %cst_35 = arith.constant 1.250000e-01 : f32
      %37 = vector.broadcast %cst_35 : f32 to vector<1x96xf32>
      %38 = arith.mulf %36, %37 : vector<1x96xf32>
      %39 = arith.mulf %33, %33 : vector<1x96xf32>
      %40 = arith.subf %38, %39 : vector<1x96xf32>
      %cst_36 = arith.constant 0.000000e+00 : f32
      %41 = vector.broadcast %cst_36 : f32 to vector<1x96xf32>
      %42 = arith.maximumf %40, %41 : vector<1x96xf32>
      %c0_37 = arith.constant 0 : index
      %c0_38 = arith.constant 0 : index
      %43 = vector.load %arg4[%c0_37, %c0_38] : memref<2x96xf32, #tpu.memory_space<vmem>>, vector<1x96xf32>
      %c1_39 = arith.constant 1 : index
      %c0_40 = arith.constant 0 : index
      %44 = vector.load %arg4[%c1_39, %c0_40] : memref<2x96xf32, #tpu.memory_space<vmem>>, vector<1x96xf32>
      %cst_41 = arith.constant 9.99999974E-6 : f32
      %45 = vector.broadcast %cst_41 : f32 to vector<1x96xf32>
      %46 = arith.addf %42, %45 : vector<1x96xf32>
      %47 = math.rsqrt %46 : vector<1x96xf32>
      %48 = arith.mulf %47, %43 : vector<1x96xf32>
      %49 = arith.mulf %33, %48 : vector<1x96xf32>
      %50 = arith.subf %44, %49 : vector<1x96xf32>
      %c0_42 = arith.constant 0 : index
      %c0_43 = arith.constant 0 : index
      %51 = vector.load %arg10[%c0_42, %c0_43] : memref<8x96xf32, #tpu.memory_space<vmem>>, vector<8x96xf32>
      tpu.vector_store %arg10[%c0_42, %c0_43], %29 {strides = array<i32>} : memref<8x96xf32, #tpu.memory_space<vmem>>, vector<8x96xf32>,
      %c0_44 = arith.constant 0 : index
      %c0_45 = arith.constant 0 : index
      %52 = vector.load %arg10[%c0_44, %c0_45] : memref<8x96xf32, #tpu.memory_space<vmem>>, vector<8x32xf32>
      %53 = vector.extract_strided_slice %48 {offsets = [0, 0], sizes = [1, 32], strides = [1, 1]} : vector<1x96xf32> to vector<1x32xf32>
      %54 = vector.broadcast %53 : vector<1x32xf32> to vector<8x32xf32>
      %55 = arith.mulf %52, %54 : vector<8x32xf32>
      %56 = vector.extract_strided_slice %50 {offsets = [0, 0], sizes = [1, 32], strides = [1, 1]} : vector<1x96xf32> to vector<1x32xf32>
      %57 = vector.broadcast %56 : vector<1x32xf32> to vector<8x32xf32>
      %58 = arith.addf %55, %57 : vector<8x32xf32>
      %cst_46 = arith.constant 0.000000e+00 : f32
      %59 = vector.broadcast %cst_46 : f32 to vector<8x32xf32>
      %60 = arith.maximumf %58, %59 : vector<8x32xf32>
      %61 = arith.truncf %60 : vector<8x32xf32> to vector<8x32xbf16>
      %c0_47 = arith.constant 0 : index
      %c0_48 = arith.constant 0 : index
      %c0_49 = arith.constant 0 : index
      %62 = vector.load %arg5[%c0_47, %c0_48, %c0_49] : memref<3x32x16xbf16, #tpu.memory_space<vmem>>, vector<1x32x16xbf16>
      %63 = vector.shape_cast %62 : vector<1x32x16xbf16> to vector<32x16xbf16>
      %cst_50 = arith.constant dense<0.000000e+00> : vector<8x16xf32>
      %64 = tpu.matmul %61, %63, %cst_50 {dimension_numbers = #tpu.dot_dimension_numbers<[1], [0], [0], [1], [0, 0, 1, 1], [], []>} : vector<8x32xbf16>, vector<32x16xbf16>, vector<8x16xf32> -> vector<8x16xf32>
      %c0_51 = arith.constant 0 : index
      %c0_52 = arith.constant 0 : index
      %c0_53 = arith.constant 0 : index
      %65 = vector.load %arg6[%c0_51, %c0_52, %c0_53] : memref<3x1x16xf32, #tpu.memory_space<vmem>>, vector<1x1x16xf32>
      %66 = vector.shape_cast %65 : vector<1x1x16xf32> to vector<1x16xf32>
      %67 = vector.broadcast %66 : vector<1x16xf32> to vector<8x16xf32>
      %68 = arith.addf %64, %67 : vector<8x16xf32>
      %69 = arith.mulf %68, %68 : vector<8x16xf32>
      %cst_54 = arith.constant dense<0.000000e+00> : vector<8xf32>
      %70 = vector.multi_reduction <add>, %69, %cst_54 [1] : vector<8x16xf32> to vector<8xf32>
      %71 = vector.shape_cast %70 : vector<8xf32> to vector<8x1xf32>
      %cst_55 = arith.constant 1.000000e-24 : f32
      %72 = vector.broadcast %cst_55 : f32 to vector<8x1xf32>
      %73 = arith.maximumf %71, %72 : vector<8x1xf32>
      %74 = math.rsqrt %73 : vector<8x1xf32>
      %75 = vector.broadcast %74 : vector<8x1xf32> to vector<8x16xf32>
      %76 = arith.mulf %68, %75 : vector<8x16xf32>
      %c0_56 = arith.constant 0 : index
      %c0_57 = arith.constant 0 : index
      %c0_58 = arith.constant 0 : index
      %77 = vector.load %arg9[%c0_56, %c0_57, %c0_58] : memref<3x8x16xf32, #tpu.memory_space<vmem>>, vector<1x8x16xf32>
      %78 = vector.shape_cast %77 : vector<1x8x16xf32> to vector<8x16xf32>
      %79 = vector.shape_cast %76 : vector<8x16xf32> to vector<1x8x16xf32>
      tpu.vector_store %arg9[%c0_56, %c0_57, %c0_58], %79 {strides = array<i32>} : memref<3x8x16xf32, #tpu.memory_space<vmem>>, vector<1x8x16xf32>,
      %80 = arith.truncf %76 : vector<8x16xf32> to vector<8x16xbf16>
      %c0_59 = arith.constant 0 : index
      %c0_60 = arith.constant 0 : index
      %c0_61 = arith.constant 0 : index
      %81 = vector.load %arg11[%c0_59, %c0_60, %c0_61] : memref<3x8x16xbf16, #tpu.memory_space<vmem>>, vector<1x8x16xbf16>
      %82 = vector.shape_cast %81 : vector<1x8x16xbf16> to vector<8x16xbf16>
      %83 = vector.shape_cast %80 : vector<8x16xbf16> to vector<1x8x16xbf16>
      tpu.vector_store %arg11[%c0_59, %c0_60, %c0_61], %83 {strides = array<i32>} : memref<3x8x16xbf16, #tpu.memory_space<vmem>>, vector<1x8x16xbf16>,
      %c0_62 = arith.constant 0 : index
      %c32 = arith.constant 32 : index
      %84 = vector.load %arg10[%c0_62, %c32] : memref<8x96xf32, #tpu.memory_space<vmem>>, vector<8x32xf32>
      %85 = vector.extract_strided_slice %48 {offsets = [0, 32], sizes = [1, 32], strides = [1, 1]} : vector<1x96xf32> to vector<1x32xf32>
      %86 = vector.broadcast %85 : vector<1x32xf32> to vector<8x32xf32>
      %87 = arith.mulf %84, %86 : vector<8x32xf32>
      %88 = vector.extract_strided_slice %50 {offsets = [0, 32], sizes = [1, 32], strides = [1, 1]} : vector<1x96xf32> to vector<1x32xf32>
      %89 = vector.broadcast %88 : vector<1x32xf32> to vector<8x32xf32>
      %90 = arith.addf %87, %89 : vector<8x32xf32>
      %cst_63 = arith.constant 0.000000e+00 : f32
      %91 = vector.broadcast %cst_63 : f32 to vector<8x32xf32>
      %92 = arith.maximumf %90, %91 : vector<8x32xf32>
      %93 = arith.truncf %92 : vector<8x32xf32> to vector<8x32xbf16>
      %c1_64 = arith.constant 1 : index
      %c0_65 = arith.constant 0 : index
      %c0_66 = arith.constant 0 : index
      %94 = vector.load %arg5[%c1_64, %c0_65, %c0_66] : memref<3x32x16xbf16, #tpu.memory_space<vmem>>, vector<1x32x16xbf16>
      %95 = vector.shape_cast %94 : vector<1x32x16xbf16> to vector<32x16xbf16>
      %cst_67 = arith.constant dense<0.000000e+00> : vector<8x16xf32>
      %96 = tpu.matmul %93, %95, %cst_67 {dimension_numbers = #tpu.dot_dimension_numbers<[1], [0], [0], [1], [0, 0, 1, 1], [], []>} : vector<8x32xbf16>, vector<32x16xbf16>, vector<8x16xf32> -> vector<8x16xf32>
      %c1_68 = arith.constant 1 : index
      %c0_69 = arith.constant 0 : index
      %c0_70 = arith.constant 0 : index
      %97 = vector.load %arg6[%c1_68, %c0_69, %c0_70] : memref<3x1x16xf32, #tpu.memory_space<vmem>>, vector<1x1x16xf32>
      %98 = vector.shape_cast %97 : vector<1x1x16xf32> to vector<1x16xf32>
      %99 = vector.broadcast %98 : vector<1x16xf32> to vector<8x16xf32>
      %100 = arith.addf %96, %99 : vector<8x16xf32>
      %101 = arith.mulf %100, %100 : vector<8x16xf32>
      %cst_71 = arith.constant dense<0.000000e+00> : vector<8xf32>
      %102 = vector.multi_reduction <add>, %101, %cst_71 [1] : vector<8x16xf32> to vector<8xf32>
      %103 = vector.shape_cast %102 : vector<8xf32> to vector<8x1xf32>
      %cst_72 = arith.constant 1.000000e-24 : f32
      %104 = vector.broadcast %cst_72 : f32 to vector<8x1xf32>
      %105 = arith.maximumf %103, %104 : vector<8x1xf32>
      %106 = math.rsqrt %105 : vector<8x1xf32>
      %107 = vector.broadcast %106 : vector<8x1xf32> to vector<8x16xf32>
      %108 = arith.mulf %100, %107 : vector<8x16xf32>
      %c1_73 = arith.constant 1 : index
      %c0_74 = arith.constant 0 : index
      %c0_75 = arith.constant 0 : index
      %109 = vector.load %arg9[%c1_73, %c0_74, %c0_75] : memref<3x8x16xf32, #tpu.memory_space<vmem>>, vector<1x8x16xf32>
      %110 = vector.shape_cast %109 : vector<1x8x16xf32> to vector<8x16xf32>
      %111 = vector.shape_cast %108 : vector<8x16xf32> to vector<1x8x16xf32>
      tpu.vector_store %arg9[%c1_73, %c0_74, %c0_75], %111 {strides = array<i32>} : memref<3x8x16xf32, #tpu.memory_space<vmem>>, vector<1x8x16xf32>,
      %112 = arith.truncf %108 : vector<8x16xf32> to vector<8x16xbf16>
      %c1_76 = arith.constant 1 : index
      %c0_77 = arith.constant 0 : index
      %c0_78 = arith.constant 0 : index
      %113 = vector.load %arg11[%c1_76, %c0_77, %c0_78] : memref<3x8x16xbf16, #tpu.memory_space<vmem>>, vector<1x8x16xbf16>
      %114 = vector.shape_cast %113 : vector<1x8x16xbf16> to vector<8x16xbf16>
      %115 = vector.shape_cast %112 : vector<8x16xbf16> to vector<1x8x16xbf16>
      tpu.vector_store %arg11[%c1_76, %c0_77, %c0_78], %115 {strides = array<i32>} : memref<3x8x16xbf16, #tpu.memory_space<vmem>>, vector<1x8x16xbf16>,
      %c0_79 = arith.constant 0 : index
      %c64 = arith.constant 64 : index
      %116 = vector.load %arg10[%c0_79, %c64] : memref<8x96xf32, #tpu.memory_space<vmem>>, vector<8x32xf32>
      %117 = vector.extract_strided_slice %48 {offsets = [0, 64], sizes = [1, 32], strides = [1, 1]} : vector<1x96xf32> to vector<1x32xf32>
      %118 = vector.broadcast %117 : vector<1x32xf32> to vector<8x32xf32>
      %119 = arith.mulf %116, %118 : vector<8x32xf32>
      %120 = vector.extract_strided_slice %50 {offsets = [0, 64], sizes = [1, 32], strides = [1, 1]} : vector<1x96xf32> to vector<1x32xf32>
      %121 = vector.broadcast %120 : vector<1x32xf32> to vector<8x32xf32>
      %122 = arith.addf %119, %121 : vector<8x32xf32>
      %cst_80 = arith.constant 0.000000e+00 : f32
      %123 = vector.broadcast %cst_80 : f32 to vector<8x32xf32>
      %124 = arith.maximumf %122, %123 : vector<8x32xf32>
      %125 = arith.truncf %124 : vector<8x32xf32> to vector<8x32xbf16>
      %c2_81 = arith.constant 2 : index
      %c0_82 = arith.constant 0 : index
      %c0_83 = arith.constant 0 : index
      %126 = vector.load %arg5[%c2_81, %c0_82, %c0_83] : memref<3x32x16xbf16, #tpu.memory_space<vmem>>, vector<1x32x16xbf16>
      %127 = vector.shape_cast %126 : vector<1x32x16xbf16> to vector<32x16xbf16>
      %cst_84 = arith.constant dense<0.000000e+00> : vector<8x16xf32>
      %128 = tpu.matmul %125, %127, %cst_84 {dimension_numbers = #tpu.dot_dimension_numbers<[1], [0], [0], [1], [0, 0, 1, 1], [], []>} : vector<8x32xbf16>, vector<32x16xbf16>, vector<8x16xf32> -> vector<8x16xf32>
      %c2_85 = arith.constant 2 : index
      %c0_86 = arith.constant 0 : index
      %c0_87 = arith.constant 0 : index
      %129 = vector.load %arg6[%c2_85, %c0_86, %c0_87] : memref<3x1x16xf32, #tpu.memory_space<vmem>>, vector<1x1x16xf32>
      %130 = vector.shape_cast %129 : vector<1x1x16xf32> to vector<1x16xf32>
      %131 = vector.broadcast %130 : vector<1x16xf32> to vector<8x16xf32>
      %132 = arith.addf %128, %131 : vector<8x16xf32>
      %133 = arith.mulf %132, %132 : vector<8x16xf32>
      %cst_88 = arith.constant dense<0.000000e+00> : vector<8xf32>
      %134 = vector.multi_reduction <add>, %133, %cst_88 [1] : vector<8x16xf32> to vector<8xf32>
      %135 = vector.shape_cast %134 : vector<8xf32> to vector<8x1xf32>
      %cst_89 = arith.constant 1.000000e-24 : f32
      %136 = vector.broadcast %cst_89 : f32 to vector<8x1xf32>
      %137 = arith.maximumf %135, %136 : vector<8x1xf32>
      %138 = math.rsqrt %137 : vector<8x1xf32>
      %139 = vector.broadcast %138 : vector<8x1xf32> to vector<8x16xf32>
      %140 = arith.mulf %132, %139 : vector<8x16xf32>
      %c2_90 = arith.constant 2 : index
      %c0_91 = arith.constant 0 : index
      %c0_92 = arith.constant 0 : index
      %141 = vector.load %arg9[%c2_90, %c0_91, %c0_92] : memref<3x8x16xf32, #tpu.memory_space<vmem>>, vector<1x8x16xf32>
      %142 = vector.shape_cast %141 : vector<1x8x16xf32> to vector<8x16xf32>
      %143 = vector.shape_cast %140 : vector<8x16xf32> to vector<1x8x16xf32>
      tpu.vector_store %arg9[%c2_90, %c0_91, %c0_92], %143 {strides = array<i32>} : memref<3x8x16xf32, #tpu.memory_space<vmem>>, vector<1x8x16xf32>,
      %144 = arith.truncf %140 : vector<8x16xf32> to vector<8x16xbf16>
      %c2_93 = arith.constant 2 : index
      %c0_94 = arith.constant 0 : index
      %c0_95 = arith.constant 0 : index
      %145 = vector.load %arg11[%c2_93, %c0_94, %c0_95] : memref<3x8x16xbf16, #tpu.memory_space<vmem>>, vector<1x8x16xbf16>
      %146 = vector.shape_cast %145 : vector<1x8x16xbf16> to vector<8x16xbf16>
      %147 = vector.shape_cast %144 : vector<8x16xbf16> to vector<1x8x16xbf16>
      tpu.vector_store %arg11[%c2_93, %c0_94, %c0_95], %147 {strides = array<i32>} : memref<3x8x16xbf16, #tpu.memory_space<vmem>>, vector<1x8x16xbf16>,
    } else {
    }
    %c0 = arith.constant 0 : index
    %c0_1 = arith.constant 0 : index
    %c0_2 = arith.constant 0 : index
    %3 = vector.load %arg11[%c0, %c0_1, %c0_2] : memref<3x8x16xbf16, #tpu.memory_space<vmem>>, vector<1x8x16xbf16>
    %4 = vector.shape_cast %3 : vector<1x8x16xbf16> to vector<8x16xbf16>
    %c0_3 = arith.constant 0 : index
    %c0_4 = arith.constant 0 : index
    %c0_5 = arith.constant 0 : index
    %5 = vector.load %arg7[%c0_3, %c0_4, %c0_5] : memref<3x16x128xbf16, #tpu.memory_space<vmem>>, vector<1x16x128xbf16>
    %6 = vector.shape_cast %5 : vector<1x16x128xbf16> to vector<16x128xbf16>
    %cst = arith.constant dense<0.000000e+00> : vector<8x128xf32>
    %7 = tpu.matmul %4, %6, %cst {dimension_numbers = #tpu.dot_dimension_numbers<[1], [0], [0], [1], [0, 0, 1, 1], [], []>} : vector<8x16xbf16>, vector<16x128xbf16>, vector<8x128xf32> -> vector<8x128xf32>
    %c0_6 = arith.constant 0 : index
    %c0_7 = arith.constant 0 : index
    %c0_8 = arith.constant 0 : index
    %8 = vector.load %arg8[%c0_6, %c0_7, %c0_8] : memref<3x8x128xf32, #tpu.memory_space<vmem>>, vector<1x8x128xf32>
    %9 = vector.shape_cast %8 : vector<1x8x128xf32> to vector<8x128xf32>
    %10 = vector.shape_cast %7 : vector<8x128xf32> to vector<1x8x128xf32>
    tpu.vector_store %arg8[%c0_6, %c0_7, %c0_8], %10 {strides = array<i32>} : memref<3x8x128xf32, #tpu.memory_space<vmem>>, vector<1x8x128xf32>,
    %c1 = arith.constant 1 : index
    %c0_9 = arith.constant 0 : index
    %c0_10 = arith.constant 0 : index
    %11 = vector.load %arg11[%c1, %c0_9, %c0_10] : memref<3x8x16xbf16, #tpu.memory_space<vmem>>, vector<1x8x16xbf16>
    %12 = vector.shape_cast %11 : vector<1x8x16xbf16> to vector<8x16xbf16>
    %c1_11 = arith.constant 1 : index
    %c0_12 = arith.constant 0 : index
    %c0_13 = arith.constant 0 : index
    %13 = vector.load %arg7[%c1_11, %c0_12, %c0_13] : memref<3x16x128xbf16, #tpu.memory_space<vmem>>, vector<1x16x128xbf16>
    %14 = vector.shape_cast %13 : vector<1x16x128xbf16> to vector<16x128xbf16>
    %cst_14 = arith.constant dense<0.000000e+00> : vector<8x128xf32>
    %15 = tpu.matmul %12, %14, %cst_14 {dimension_numbers = #tpu.dot_dimension_numbers<[1], [0], [0], [1], [0, 0, 1, 1], [], []>} : vector<8x16xbf16>, vector<16x128xbf16>, vector<8x128xf32> -> vector<8x128xf32>
    %c1_15 = arith.constant 1 : index
    %c0_16 = arith.constant 0 : index
    %c0_17 = arith.constant 0 : index
    %16 = vector.load %arg8[%c1_15, %c0_16, %c0_17] : memref<3x8x128xf32, #tpu.memory_space<vmem>>, vector<1x8x128xf32>
    %17 = vector.shape_cast %16 : vector<1x8x128xf32> to vector<8x128xf32>
    %18 = vector.shape_cast %15 : vector<8x128xf32> to vector<1x8x128xf32>
    tpu.vector_store %arg8[%c1_15, %c0_16, %c0_17], %18 {strides = array<i32>} : memref<3x8x128xf32, #tpu.memory_space<vmem>>, vector<1x8x128xf32>,
    %c2 = arith.constant 2 : index
    %c0_18 = arith.constant 0 : index
    %c0_19 = arith.constant 0 : index
    %19 = vector.load %arg11[%c2, %c0_18, %c0_19] : memref<3x8x16xbf16, #tpu.memory_space<vmem>>, vector<1x8x16xbf16>
    %20 = vector.shape_cast %19 : vector<1x8x16xbf16> to vector<8x16xbf16>
    %c2_20 = arith.constant 2 : index
    %c0_21 = arith.constant 0 : index
    %c0_22 = arith.constant 0 : index
    %21 = vector.load %arg7[%c2_20, %c0_21, %c0_22] : memref<3x16x128xbf16, #tpu.memory_space<vmem>>, vector<1x16x128xbf16>
    %22 = vector.shape_cast %21 : vector<1x16x128xbf16> to vector<16x128xbf16>
    %cst_23 = arith.constant dense<0.000000e+00> : vector<8x128xf32>
    %23 = tpu.matmul %20, %22, %cst_23 {dimension_numbers = #tpu.dot_dimension_numbers<[1], [0], [0], [1], [0, 0, 1, 1], [], []>} : vector<8x16xbf16>, vector<16x128xbf16>, vector<8x128xf32> -> vector<8x128xf32>
    %c2_24 = arith.constant 2 : index
    %c0_25 = arith.constant 0 : index
    %c0_26 = arith.constant 0 : index
    %24 = vector.load %arg8[%c2_24, %c0_25, %c0_26] : memref<3x8x128xf32, #tpu.memory_space<vmem>>, vector<1x8x128xf32>
    %25 = vector.shape_cast %24 : vector<1x8x128xf32> to vector<8x128xf32>
    %26 = vector.shape_cast %23 : vector<8x128xf32> to vector<1x8x128xf32>
    tpu.vector_store %arg8[%c2_24, %c0_25, %c0_26], %26 {strides = array<i32>} : memref<3x8x128xf32, #tpu.memory_space<vmem>>, vector<1x8x128xf32>,
    return
  }
  func.func @transform_0(%arg0: i32, %arg1: i32) -> (i32, i32) {
    %c0_i32 = arith.constant 0 : i32
    %c0_i32_0 = arith.constant 0 : i32
    %c0_i32_1 = arith.constant 0 : i32
    return %c0_i32, %c0_i32_0 : i32, i32
  }
  func.func @transform_1(%arg0: i32, %arg1: i32) -> (i32, i32) {
    %c0_i32 = arith.constant 0 : i32
    %c0_i32_0 = arith.constant 0 : i32
    return %c0_i32, %arg0 : i32, i32
  }
  func.func @transform_2(%arg0: i32, %arg1: i32) -> (i32, i32) {
    %c0_i32 = arith.constant 0 : i32
    %c0_i32_0 = arith.constant 0 : i32
    return %c0_i32, %arg0 : i32, i32
  }
  func.func @transform_3(%arg0: i32, %arg1: i32) -> (i32, i32, i32) {
    %c0_i32 = arith.constant 0 : i32
    %c0_i32_0 = arith.constant 0 : i32
    %c0_i32_1 = arith.constant 0 : i32
    return %arg0, %c0_i32, %c0_i32_0 : i32, i32, i32
  }
  func.func @transform_4(%arg0: i32, %arg1: i32) -> (i32, i32, i32) {
    %c0_i32 = arith.constant 0 : i32
    %c0_i32_0 = arith.constant 0 : i32
    %c0_i32_1 = arith.constant 0 : i32
    return %arg0, %c0_i32, %c0_i32_0 : i32, i32, i32
  }
  func.func @transform_5(%arg0: i32, %arg1: i32) -> (i32, i32, i32) {
    %c0_i32 = arith.constant 0 : i32
    %c0_i32_0 = arith.constant 0 : i32
    return %arg0, %c0_i32, %arg1 : i32, i32, i32
  }
  func.func @transform_6(%arg0: i32, %arg1: i32) -> (i32, i32, i32) {
    %c0_i32 = arith.constant 0 : i32
    %c0_i32_0 = arith.constant 0 : i32
    return %arg0, %c0_i32, %arg1 : i32, i32, i32
  }
  func.func @transform_7(%arg0: i32, %arg1: i32) -> (i32, i32, i32) {
    %c0_i32 = arith.constant 0 : i32
    %c0_i32_0 = arith.constant 0 : i32
    %c0_i32_1 = arith.constant 0 : i32
    return %arg0, %c0_i32, %c0_i32_0 : i32, i32, i32
  }
}

</mosaic_0001>

<llo_original>
// kernel: multihead_forward.1
$region0: #{multihead_forward.1}
  #allocation0 [shape = 'u32[]', space=smem, size = 0x4, offset = 0x4, fixed_abs, tag = 'smem constant byte address 0x4 - core index']
  #allocation1 [shape = 'u32[72,128]{1,0:T(1,128)}', space=vmem, size = 0x9000, scoped, tag = 'internal scratch']
  #allocation2 [shape = 'f32[8,96]{1,0:T(8,128)}', space=vmem, size = 0x1000, scoped, tag = 'scratch operand']
  #allocation3 [shape = 'bf16[3,8,16]{2,1,0:T(8,128)(2,1)}', space=vmem, size = 0x1800, scoped, tag = 'scratch operand']
  %s0 = inlined_call_operand.vmem [shape: bf16[8,32], index: 0, kind: input, shape index: {}]
  %s1 = inlined_call_operand.vmem [shape: bf16[32,96], index: 1, kind: input, shape index: {}]
  %s2 = inlined_call_operand.vmem [shape: f32[2,96], index: 2, kind: input, shape index: {}]
  %s3 = inlined_call_operand.vmem [shape: bf16[3,32,16], index: 3, kind: input, shape index: {}]
  %s4 = inlined_call_operand.vmem [shape: f32[3,1,16], index: 4, kind: input, shape index: {}]
  %s5 = inlined_call_operand.vmem [shape: bf16[3,16,128], index: 5, kind: input, shape index: {}]
  %s6 = inlined_call_operand.hbm [shape: f32[3,8,128], index: 6, kind: output, shape index: {0}]
  %s7 = inlined_call_operand.hbm [shape: f32[3,8,16], index: 7, kind: output, shape index: {1}]
  %8 = xla_tuple %s6, %s7
  %s9 = sld [smem:[#allocation0]]
  $region46: #{multihead_forward.1} parent=0
    _
  %s11 = ssub.s32 1, %s9
  %s12 = scalar_select 0, %s11, %s9
  $region1: #{multihead_forward.1} parent=0
    #allocation4 [shape = 'u8[12288]{0}', space=vmem, size = 0x3000, scoped, tag = 'output window, operand 0, single buffered']
    #allocation5 [shape = 's32[1]{0}', space=sflag, size = 0x4, scoped, tag = 'scoped memory for multihead_forward.1']
    #allocation6 [shape = 'u8[12288]{0}', space=vmem, size = 0x3000, scoped, tag = 'output window, operand 1, single buffered']
    #allocation7 [shape = 's32[1]{0}', space=sflag, size = 0x4, scoped, tag = 'scoped memory for multihead_forward.1']
    %13 = vsyncpa [#allocation5], 0
    %14 = vsyncpa [#allocation7], 0
    // Predicated region
    $region2: #{multihead_forward.1} parent=1 // pred_check
      _
    $region3: #{multihead_forward.1} parent=1 // pred_check_branch
      %16 = sbr.rel (0) target = $region5
    $region4: #{multihead_forward.1} parent=1 // pred_region
      _
    $region5: #{multihead_forward.1} parent=1 // pred_fallthru
      _
    // Predicated region
    $region6: #{multihead_forward.1} parent=1 // pred_check
      _
    $region7: #{multihead_forward.1} parent=1 // pred_check_branch
      %18 = sbr.rel (0) target = $region9
    $region8: #{multihead_forward.1} parent=1 // pred_region
      _
    $region9: #{multihead_forward.1} parent=1 // pred_fallthru
      _
    // Predicated region
    $region10: #{multihead_forward.1} parent=1 // pred_check
      _
    $region11: #{multihead_forward.1} parent=1 // pred_check_branch
      %20 = sbr.rel (0) target = $region13
    $region12: #{multihead_forward.1} parent=1 // pred_region
      _
    $region13: #{multihead_forward.1} parent=1 // pred_fallthru
      _
    // Predicated region
    $region14: #{multihead_forward.1} parent=1 // pred_check
      _
    $region15: #{multihead_forward.1} parent=1 // pred_check_branch
      %22 = sbr.rel (0) target = $region17
    $region16: #{multihead_forward.1} parent=1 // pred_region
      _
    $region17: #{multihead_forward.1} parent=1 // pred_fallthru
      _
    // Predicated region
    $region18: #{multihead_forward.1} parent=1 // pred_check
      _
    $region19: #{multihead_forward.1} parent=1 // pred_check_branch
      %24 = sbr.rel (0) target = $region21
    $region20: #{multihead_forward.1} parent=1 // pred_region
      _
    $region21: #{multihead_forward.1} parent=1 // pred_fallthru
      _
    // Predicated region
    $region22: #{multihead_forward.1} parent=1 // pred_check
      _
    $region23: #{multihead_forward.1} parent=1 // pred_check_branch
      %26 = sbr.rel (0) target = $region25
    $region24: #{multihead_forward.1} parent=1 // pred_region
      _
    $region25: #{multihead_forward.1} parent=1 // pred_fallthru
      _
    %p28 = scmp.eq.s32.totalorder 0, 0
    // Predicated region
    $region26: #{multihead_forward.1} parent=1 // pred_check
      %p29 = pneg %p28
    $region27: #{multihead_forward.1} parent=1 // pred_check_branch
      %31 = sbr.rel (%p29) target = $region29
    $region28: #{multihead_forward.1} parent=1 // pred_region
      %v32 = vld [vmem:[%s0] sm:$0xf]
      %v33 = vld [vmem:[%s1] sm:$0xf]
      %v34 = vld [vmem:[%s1 + $0x4] sm:$0xf]
      %v35 = vld [vmem:[%s1 + $0x8] sm:$0xf]
      %v36 = vld [vmem:[%s1 + $0xc] sm:$0xf]
      %v41 = vunpack.c.l.b16 %v33
      %v42 = vunpack.c.l.b16 %v34
      %v43 = vunpack.c.l.b16 %v35
      %v44 = vunpack.c.l.b16 %v36
      %v45 = vpack.c.b16 %v42, %v41
      %v46 = vpack.c.b16 %v44, %v43
      %vm49 = vcmask 261120
      %v51 = vsel %vm49, %v32, 0
      %53 = vmatpush.bf16.msra.mxu0 0
      %54 = vmatpush.bf16.msra.mxu0 0
      %55 = vmatpush.bf16.msra.mxu0 0
      %56 = vmatpush.bf16.msra.mxu0 0
      %57 = vmatpush.bf16.msra.mxu0 0
      %58 = vmatpush.bf16.msra.mxu0 0
      %59 = vmatpush.bf16.msra.mxu0 %v46
      %60 = vmatpush.bf16.msra.mxu0 %v45
      %61 = vmatmul.bf16.gmra.mxu0 %v51
      %v62 = vpop.f32.mrf.mxu0
      %v63 = vadd.f32 0.0, %v62
      %v64 = vpop.f32.mrf.mxu0
      %65 = vdwg.mxu0
      %vm66 = vcmask 785408
      %v67 = vsel %vm66, %v63, 0.0
      %v68 = vrot.slane %v67, 4
      %v69 = vadd.f32 %v67, %v68
      %v70 = vrot.slane %v69, 2
      %v71 = vadd.f32 %v69, %v70
      %v72 = vrot.slane %v71, 1
      %v73 = vadd.f32 %v71, %v72
      %v74 = vmul.f32 %v73, 0.125
      %v75 = vmul.f32 %v63, %v63
      %v76 = vsel %vm66, %v75, 0.0
      %v77 = vrot.slane %v76, 4
      %v78 = vadd.f32 %v76, %v77
      %v79 = vrot.slane %v78, 2
      %v80 = vadd.f32 %v78, %v79
      %v81 = vrot.slane %v80, 1
      %v82 = vadd.f32 %v80, %v81
      %v83 = vmul.f32 %v82, 0.125
      %v84 = vmul.f32 %v74, %v74
      %v85 = vsub.f32 %v83, %v84
      %v86 = vmax.f32 %v85, 0.0
      %v87 = vld [vmem:[%s2] sm:$0x1]
      %v88 = vld [vmem:[%s2 + $0x1] sm:$0x1]
      %v89 = vadd.f32 %v86, 1e-05
      %v90 = vrsqrt.pop %v89
      %v91 = vmul.f32 %v90, %v89
      %v92 = vmul.f32 %v91, %v90
      %v93 = vmul.f32 0.5, %v92
      %v94 = vsub.f32 1.5, %v93
      %v95 = vmul.f32 %v90, %v94
      %vm96 = vweird.f32 %v89
      %vm97 = vweird.f32 %v90
      %vm98 = vmor %vm96, %vm97
      %v99 = vsel %vm98, %v90, %v95
      %v100 = vmul.f32 %v99, %v87
      %v101 = vmul.f32 %v74, %v100
      %v102 = vsub.f32 %v88, %v101
      %103 = vst.msk [vmem:[#allocation2] sm:$0xff] %vm66, %v63
      %v104 = vld [vmem:[#allocation2] sm:$0xff]
      %v105 = vperm.slane %v100, 0
      %v106 = vmul.f32 %v104, %v105
      %v107 = vperm.slane %v102, 0
      %v108 = vadd.f32 %v106, %v107
      %v109 = vmax.f32 %v108, 0.0
      %v110 = vpack.c.bf16 %v109, %v109
      %v111 = vld [vmem:[%s3] sm:$0xf]
      %v112 = vld [vmem:[%s3 + $0x4] sm:$0xf]
      %v113 = vld [vmem:[%s3 + $0x8] sm:$0xf]
      %v114 = vld [vmem:[%s3 + $0xc] sm:$0xf]
      %v115 = vld [vmem:[%s4] sm:$0x1]
      %v117 = vperm.slane %v115, 0
      %v123 = vunpack.c.l.b16 %v111
      %v124 = vunpack.c.l.b16 %v112
      %v125 = vunpack.c.l.b16 %v113
      %v126 = vunpack.c.l.b16 %v114
      %v127 = vpack.c.b16 %v124, %v123
      %v128 = vpack.c.b16 %v126, %v125
      %v132 = vsel %vm49, %v110, 0
      %134 = vmatpush.bf16.msra.mxu0 0
      %135 = vmatpush.bf16.msra.mxu0 0
      %136 = vmatpush.bf16.msra.mxu0 0
      %137 = vmatpush.bf16.msra.mxu0 0
      %138 = vmatpush.bf16.msra.mxu0 0
      %139 = vmatpush.bf16.msra.mxu0 0
      %140 = vmatpush.bf16.msra.mxu0 %v128
      %141 = vmatpush.bf16.msra.mxu0 %v127
      %142 = vmatmul.bf16.gmra.mxu0 %v132
      %v143 = vpop.f32.mrf.mxu0
      %v144 = vadd.f32 %v117, %v143
      %v145 = vpop.f32.mrf.mxu0
      %146 = vdwg.mxu0
      %v147 = vmul.f32 %v144, %v144
      %vm148 = vcmask 130048
      %v149 = vsel %vm148, %v147, 0.0
      %150 = vadd.xlane.f32.xlu0 %v149
      %v151 = vpop.xlane.xlu0 %150
      %v152 = vmax.f32 %v151, 1e-24
      %v153 = vrsqrt.pop %v152
      %v154 = vmul.f32 %v153, %v152
      %v155 = vmul.f32 %v154, %v153
      %v156 = vmul.f32 0.5, %v155
      %v157 = vsub.f32 1.5, %v156
      %v158 = vmul.f32 %v153, %v157
      %vm159 = vweird.f32 %v152
      %vm160 = vweird.f32 %v153
      %vm161 = vmor %vm159, %vm160
      %v162 = vsel %vm161, %v153, %v158
      %v163 = vmul.f32 %v144, %v162
      %164 = vst.msk [vmem:[#allocation6] sm:$0xff] %vm148, %v163
      %v165 = vpack.c.bf16 %v163, %v163
      %vm166 = vcmask 125952
      %167 = vst.msk [vmem:[#allocation3] sm:$0xf] %vm166, %v165
      %v168 = vld [vmem:[#allocation2] sm:$0xff]
      %v169 = vmul.f32 %v168, %v105
      %v170 = vadd.f32 %v169, %v107
      %v171 = vmax.f32 %v170, 0.0
      %v172 = vpack.c.bf16 %v171, %v171
      %s173 = scalar_lea.vmem %s3, 16
      %v174 = vld [vmem:[%s173] sm:$0xf]
      %v175 = vld [vmem:[%s173 + $0x4] sm:$0xf]
      %v176 = vld [vmem:[%s173 + $0x8] sm:$0xf]
      %v177 = vld [vmem:[%s173 + $0xc] sm:$0xf]
      %s178 = scalar_lea.vmem %s4, 1
      %v179 = vld [vmem:[%s178] sm:$0x1]
      %v181 = vperm.slane %v179, 0
      %184 = vrot.lane.b32.xlu0 %v172, 96
      %v185 = vpop.permute.xlu0 %184
      %v190 = vunpack.c.l.b16 %v174
      %v191 = vunpack.c.l.b16 %v175
      %v192 = vunpack.c.l.b16 %v176
      %v193 = vunpack.c.l.b16 %v177
      %v194 = vpack.c.b16 %v191, %v190
      %v195 = vpack.c.b16 %v193, %v192
      %v199 = vsel %vm49, %v185, 0
      %201 = vmatpush.bf16.msra.mxu0 0
      %202 = vmatpush.bf16.msra.mxu0 0
      %203 = vmatpush.bf16.msra.mxu0 0
      %204 = vmatpush.bf16.msra.mxu0 0
      %205 = vmatpush.bf16.msra.mxu0 0
      %206 = vmatpush.bf16.msra.mxu0 0
      %207 = vmatpush.bf16.msra.mxu0 %v195
      %208 = vmatpush.bf16.msra.mxu0 %v194
      %209 = vmatmul.bf16.gmra.mxu0 %v199
      %v210 = vpop.f32.mrf.mxu0
      %v211 = vadd.f32 %v181, %v210
      %v212 = vpop.f32.mrf.mxu0
      %213 = vdwg.mxu0
      %v214 = vmul.f32 %v211, %v211
      %v215 = vsel %vm148, %v214, 0.0
      %216 = vadd.xlane.f32.xlu0 %v215
      %v217 = vpop.xlane.xlu0 %216
      %v218 = vmax.f32 %v217, 1e-24
      %v219 = vrsqrt.pop %v218
      %v220 = vmul.f32 %v219, %v218
      %v221 = vmul.f32 %v220, %v219
      %v222 = vmul.f32 0.5, %v221
      %v223 = vsub.f32 1.5, %v222
      %v224 = vmul.f32 %v219, %v223
      %vm225 = vweird.f32 %v218
      %vm226 = vweird.f32 %v219
      %vm227 = vmor %vm225, %vm226
      %v228 = vsel %vm227, %v219, %v224
      %v229 = vmul.f32 %v211, %v228
      %s230 = scalar_lea.vmem [#allocation6], 8
      %231 = vst.msk [vmem:[%s230] sm:$0xff] %vm148, %v229
      %v232 = vpack.c.bf16 %v229, %v229
      %s233 = scalar_lea.vmem [#allocation3], 4
      %234 = vst.msk [vmem:[%s233] sm:$0xf] %vm166, %v232
      %v235 = vld [vmem:[#allocation2] sm:$0xff]
      %v236 = vmul.f32 %v235, %v105
      %v237 = vadd.f32 %v236, %v107
      %v238 = vmax.f32 %v237, 0.0
      %v239 = vpack.c.bf16 %v238, %v238
      %s240 = scalar_lea.vmem %s3, 32
      %v241 = vld [vmem:[%s240] sm:$0xf]
      %v242 = vld [vmem:[%s240 + $0x4] sm:$0xf]
      %v243 = vld [vmem:[%s240 + $0x8] sm:$0xf]
      %v244 = vld [vmem:[%s240 + $0xc] sm:$0xf]
      %s245 = scalar_lea.vmem %s4, 2
      %v246 = vld [vmem:[%s245] sm:$0x1]
      %v248 = vperm.slane %v246, 0
      %251 = vrot.lane.b32.xlu0 %v239, 64
      %v252 = vpop.permute.xlu0 %251
      %v257 = vunpack.c.l.b16 %v241
      %v258 = vunpack.c.l.b16 %v242
      %v259 = vunpack.c.l.b16 %v243
      %v260 = vunpack.c.l.b16 %v244
      %v261 = vpack.c.b16 %v258, %v257
      %v262 = vpack.c.b16 %v260, %v259
      %v266 = vsel %vm49, %v252, 0
      %268 = vmatpush.bf16.msra.mxu0 0
      %269 = vmatpush.bf16.msra.mxu0 0
      %270 = vmatpush.bf16.msra.mxu0 0
      %271 = vmatpush.bf16.msra.mxu0 0
      %272 = vmatpush.bf16.msra.mxu0 0
      %273 = vmatpush.bf16.msra.mxu0 0
      %274 = vmatpush.bf16.msra.mxu0 %v262
      %275 = vmatpush.bf16.msra.mxu0 %v261
      %276 = vmatmul.bf16.gmra.mxu0 %v266
      %v277 = vpop.f32.mrf.mxu0
      %v278 = vadd.f32 %v248, %v277
      %v279 = vpop.f32.mrf.mxu0
      %280 = vdwg.mxu0
      %v281 = vmul.f32 %v278, %v278
      %v282 = vsel %vm148, %v281, 0.0
      %283 = vadd.xlane.f32.xlu0 %v282
      %v284 = vpop.xlane.xlu0 %283
      %v285 = vmax.f32 %v284, 1e-24
      %v286 = vrsqrt.pop %v285
      %v287 = vmul.f32 %v286, %v285
      %v288 = vmul.f32 %v287, %v286
      %v289 = vmul.f32 0.5, %v288
      %v290 = vsub.f32 1.5, %v289
      %v291 = vmul.f32 %v286, %v290
      %vm292 = vweird.f32 %v285
      %vm293 = vweird.f32 %v286
      %vm294 = vmor %vm292, %vm293
      %v295 = vsel %vm294, %v286, %v291
      %v296 = vmul.f32 %v278, %v295
      %s297 = scalar_lea.vmem [#allocation6], 16
      %298 = vst.msk [vmem:[%s297] sm:$0xff] %vm148, %v296
      %v299 = vpack.c.bf16 %v296, %v296
      %s300 = scalar_lea.vmem [#allocation3], 8
      %301 = vst.msk [vmem:[%s300] sm:$0xf] %vm166, %v299
    $region29: #{multihead_forward.1} parent=1 // pred_fallthru
      _
    %v302 = vld [vmem:[#allocation3] sm:$0xf]
    %v303 = vld [vmem:[%s5] sm:$0xf]
    %v304 = vld [vmem:[%s5 + $0x4] sm:$0xf]
    %v307 = vunpack.c.l.b16 %v303
    %v308 = vunpack.c.l.b16 %v304
    %v309 = vpack.c.b16 %v308, %v307
    %vm311 = vcmask 130048
    %v313 = vsel %vm311, %v302, 0
    %315 = vmatpush.bf16.msra.mxu0 0
    %316 = vmatpush.bf16.msra.mxu0 0
    %317 = vmatpush.bf16.msra.mxu0 0
    %318 = vmatpush.bf16.msra.mxu0 0
    %319 = vmatpush.bf16.msra.mxu0 0
    %320 = vmatpush.bf16.msra.mxu0 0
    %321 = vmatpush.bf16.msra.mxu0 0
    %322 = vmatpush.bf16.msra.mxu0 %v309
    %323 = vmatmul.bf16.gmra.mxu0 %v313
    %v324 = vpop.f32.mrf.mxu0
    %v325 = vadd.f32 0.0, %v324
    %v326 = vpop.f32.mrf.mxu0
    %327 = vdwg.mxu0
    %328 = vst [vmem:[#allocation4] sm:$0xff] %v325
    %s329 = scalar_lea.vmem [#allocation3], 4
    %v330 = vld [vmem:[%s329] sm:$0xf]
    %s331 = scalar_lea.vmem %s5, 8
    %v332 = vld [vmem:[%s331] sm:$0xf]
    %v333 = vld [vmem:[%s331 + $0x4] sm:$0xf]
    %v336 = vunpack.c.l.b16 %v332
    %v337 = vunpack.c.l.b16 %v333
    %v338 = vpack.c.b16 %v337, %v336
    %v341 = vsel %vm311, %v330, 0
    %343 = vmatpush.bf16.msra.mxu0 0
    %344 = vmatpush.bf16.msra.mxu0 0
    %345 = vmatpush.bf16.msra.mxu0 0
    %346 = vmatpush.bf16.msra.mxu0 0
    %347 = vmatpush.bf16.msra.mxu0 0
    %348 = vmatpush.bf16.msra.mxu0 0
    %349 = vmatpush.bf16.msra.mxu0 0
    %350 = vmatpush.bf16.msra.mxu0 %v338
    %351 = vmatmul.bf16.gmra.mxu0 %v341
    %v352 = vpop.f32.mrf.mxu0
    %v353 = vadd.f32 0.0, %v352
    %v354 = vpop.f32.mrf.mxu0
    %355 = vdwg.mxu0
    %s356 = scalar_lea.vmem [#allocation4], 8
    %357 = vst [vmem:[%s356] sm:$0xff] %v353
    %s358 = scalar_lea.vmem [#allocation3], 8
    %v359 = vld [vmem:[%s358] sm:$0xf]
    %s360 = scalar_lea.vmem %s5, 16
    %v361 = vld [vmem:[%s360] sm:$0xf]
    %v362 = vld [vmem:[%s360 + $0x4] sm:$0xf]
    %v365 = vunpack.c.l.b16 %v361
    %v366 = vunpack.c.l.b16 %v362
    %v367 = vpack.c.b16 %v366, %v365
    %v370 = vsel %vm311, %v359, 0
    %372 = vmatpush.bf16.msra.mxu0 0
    %373 = vmatpush.bf16.msra.mxu0 0
    %374 = vmatpush.bf16.msra.mxu0 0
    %375 = vmatpush.bf16.msra.mxu0 0
    %376 = vmatpush.bf16.msra.mxu0 0
    %377 = vmatpush.bf16.msra.mxu0 0
    %378 = vmatpush.bf16.msra.mxu0 0
    %379 = vmatpush.bf16.msra.mxu0 %v367
    %380 = vmatmul.bf16.gmra.mxu0 %v370
    %v381 = vpop.f32.mrf.mxu0
    %v382 = vadd.f32 0.0, %v381
    %v383 = vpop.f32.mrf.mxu0
    %384 = vdwg.mxu0
    %s385 = scalar_lea.vmem [#allocation4], 16
    %386 = vst [vmem:[%s385] sm:$0xff] %v382
    // Predicated region
    $region30: #{multihead_forward.1} parent=1 // pred_check
      _
    $region31: #{multihead_forward.1} parent=1 // pred_check_branch
      %388 = sbr.rel (0) target = $region33
    $region32: #{multihead_forward.1} parent=1 // pred_region
      %390 = vsyncadd [#allocation5], 0
      %s391 = sshll.u32 [#allocation4], 4
      %s392 = int_to_ptr.vmem [resolvable:$true] %s391
      %s393 = sshll.u32 %s6, 4
      %s394 = int_to_ptr.hbm [resolvable:$true] %s393
      %399 = dma.vmem_to_hbm [thread:$0]  %s392, 384, %s394, [#allocation5], 128, 128, 8
    $region33: #{multihead_forward.1} parent=1 // pred_fallthru
      _
    // Predicated region
    $region34: #{multihead_forward.1} parent=1 // pred_check
      _
    $region35: #{multihead_forward.1} parent=1 // pred_check_branch
      %401 = sbr.rel (0) target = $region37
    $region36: #{multihead_forward.1} parent=1 // pred_region
      %403 = vsyncadd [#allocation7], 0
      %s404 = sshll.u32 [#allocation6], 4
      %s405 = int_to_ptr.vmem [resolvable:$true] %s404
      %s406 = sshll.u32 %s7, 4
      %s407 = int_to_ptr.hbm [resolvable:$true] %s406
      %412 = dma.vmem_to_hbm [thread:$0]  %s405, 384, %s407, [#allocation7], 128, 128, 8
    $region37: #{multihead_forward.1} parent=1 // pred_fallthru
      _
    // Predicated region
    $region38: #{multihead_forward.1} parent=1 // pred_check
      _
    $region39: #{multihead_forward.1} parent=1 // pred_check_branch
      %414 = sbr.rel (0) target = $region41
    $region40: #{multihead_forward.1} parent=1 // pred_region
      %416 = dma.done [#allocation5], 384
    $region41: #{multihead_forward.1} parent=1 // pred_fallthru
      _
    // Predicated region
    $region42: #{multihead_forward.1} parent=1 // pred_check
      _
    $region43: #{multihead_forward.1} parent=1 // pred_check_branch
      %418 = sbr.rel (0) target = $region45
    $region44: #{multihead_forward.1} parent=1 // pred_region
      %420 = dma.done [#allocation7], 384
    $region45: #{multihead_forward.1} parent=1 // pred_fallthru
      _
    %421 = vsyncpa [#allocation5], 1
    %422 = vsyncpa [#allocation7], 1

</llo_original>
